<compile_context>
chip_gen: v7x
topology: tpu7x:2x2x1
jax: 0.10.0
libtpu: 0.0.40
codegen_flags: <defaults>
</compile_context>

<pallas_src>
import functools

import jax
import jax.numpy as jnp
from jax import lax
from jax.experimental import pallas as pl
from jax.experimental.pallas import tpu as pltpu

EPS = 1e-5


def _ibn1d_kernel(x_ref, a_ref, b_ref, o_ref, *, half, c_blk):
    # x tile: (1, c_blk, L), native dtype (lane-dense on L).
    x = x_ref[...].astype(jnp.float32)
    L = x_ref.shape[-1]
    inv_l = jnp.float32(1.0 / L)

    # Single traversal of the VMEM tile: sum and sum-of-squares together.
    s1 = jnp.sum(x, axis=-1, keepdims=True)            # (1, c_blk, 1) f32
    s2 = jnp.sum(x * x, axis=-1, keepdims=True)        # (1, c_blk, 1) f32
    mu = s1 * inv_l
    var = jnp.maximum(s2 * inv_l - mu * mu, 0.0)        # biased variance

    a = a_ref[...]                                      # (c_blk, 1): IN gamma / BN scale
    b = b_ref[...]                                      # (c_blk, 1): IN beta  / BN shift

    # InstanceNorm path with mu folded into the shift:
    #   out = x * (gamma * rsqrt(var+eps)) + (beta - mu * gamma * rsqrt(var+eps))
    in_scale = a * lax.rsqrt(var + EPS)                 # (1, c_blk, 1)
    in_shift = b - mu * in_scale

    # Per-channel dispatch: global channel index < half -> InstanceNorm half,
    # otherwise BatchNorm half (whose scale/shift were prefolded in the wrapper).
    ch = (pl.program_id(1) * c_blk
          + lax.broadcasted_iota(jnp.int32, (c_blk, 1), 0))
    is_in = ch < half
    scale = jnp.where(is_in, in_scale, a)
    shift = jnp.where(is_in, in_shift, b)

    # One mul + one add per element on the store path.
    o_ref[...] = (x * scale + shift).astype(o_ref.dtype)


def _pick_channel_block(C, L, itemsize, target_bytes=4 * 1024 * 1024):
    """Largest multiple-of-8 divisor of C whose (c_blk, L) tile fits target_bytes."""
    if C % 8 != 0:
        return C                                        # small/odd C: full-extent block
    best = None
    for cand in range(8, C + 1, 8):
        if C % cand == 0 and cand * L * itemsize <= target_bytes:
            best = cand
    return best if best is not None else 8


def ibn1d(x, in_gamma, in_beta, bn_gamma, bn_beta, *, ratio=0.5):
    """IBN1D forward (train mode). x: (N, C, L); in_*: (half,); bn_*: (C-half,)."""
    N, C, L = x.shape
    half = int(C * ratio)          # matches PyTorch's int(planes * ratio)
    f32 = jnp.float32

    # ---- BatchNorm training-mode batch stats: one fused pass ----------------
    # Accumulate sum / sum-of-squares in f32; XLA fuses slice + square + reduce
    # into a single read of the BN half (no full f32 copy, no second pass).
    xbn = x[:, half:, :]
    cnt = f32(N * L)
    s1 = jnp.sum(xbn, axis=(0, 2), dtype=f32)
    s2 = jnp.sum(jnp.square(xbn.astype(f32)), axis=(0, 2))
    mu_b = s1 / cnt
    var_b = jnp.maximum(s2 / cnt - mu_b * mu_b, 0.0)    # biased variance
    bn_scale = bn_gamma.astype(f32) * lax.rsqrt(var_b + EPS)
    bn_shift = bn_beta.astype(f32) - mu_b * bn_scale
    # TODO(synk): BatchNorm running_mean/running_var buffer updates (training
    # state) are not emitted; only the forward output is produced.

    # Per-channel parameter vectors over the FULL channel axis:
    #   IN channels carry (gamma, beta); BN channels carry prefolded (scale, shift).
    A = jnp.concatenate([in_gamma.astype(f32), bn_scale]).reshape(C, 1)
    B = jnp.concatenate([in_beta.astype(f32), bn_shift]).reshape(C, 1)

    itemsize = jnp.dtype(x.dtype).itemsize
    c_blk = _pick_channel_block(C, L, itemsize)
    grid = (N, C // c_blk)

    # VMEM limit derived from actual tile size (double-buffered in + out tiles
    # plus f32 intermediates), clamped under v7x's 64 MiB physical VMEM.
    blk_bytes = c_blk * L * itemsize
    vmem_limit = int(min(64 * 1024 * 1024, max(32 * 1024 * 1024, 8 * blk_bytes)))

    kernel = functools.partial(_ibn1d_kernel, half=half, c_blk=c_blk)

    return pl.pallas_call(
        kernel,
        out_shape=jax.ShapeDtypeStruct((N, C, L), x.dtype),
        grid_spec=pltpu.PrefetchScalarGridSpec(
            num_scalar_prefetch=0,
            grid=grid,
            in_specs=[
                pl.BlockSpec((1, c_blk, L), lambda n, c: (n, c, 0)),
                pl.BlockSpec((c_blk, 1), lambda n, c: (c, 0)),
                pl.BlockSpec((c_blk, 1), lambda n, c: (c, 0)),
            ],
            out_specs=pl.BlockSpec((1, c_blk, L), lambda n, c: (n, c, 0)),
        ),
        compiler_params=pltpu.CompilerParams(
            # Every (sample, channel-block) tile is independent -> both axes
            # parallel; keeps both v7x TensorCores busy even for small N.
            dimension_semantics=("parallel", "parallel"),
            vmem_limit_bytes=vmem_limit,
        ),
    )(x, A, B)


def ibn1d_ref(x, in_gamma, in_beta, bn_gamma, bn_beta, *, ratio=0.5):
    """Pure-JAX reference (mirrors PyTorch IBN1D in train mode, two-pass stats)."""
    N, C, L = x.shape
    half = int(C * ratio)
    x = x.astype(jnp.float32)
    x_in, x_bn = x[:, :half, :], x[:, half:, :]

    mu = jnp.mean(x_in, axis=-1, keepdims=True)
    var = jnp.mean((x_in - mu) ** 2, axis=-1, keepdims=True)
    y_in = (x_in - mu) / jnp.sqrt(var + EPS)
    y_in = y_in * in_gamma[None, :, None] + in_beta[None, :, None]

    mu_b = jnp.mean(x_bn, axis=(0, 2), keepdims=True)
    var_b = jnp.mean((x_bn - mu_b) ** 2, axis=(0, 2), keepdims=True)
    y_bn = (x_bn - mu_b) / jnp.sqrt(var_b + EPS)
    y_bn = y_bn * bn_gamma[None, :, None] + bn_beta[None, :, None]

    return jnp.concatenate([y_in, y_bn], axis=1)


if __name__ == "__main__":
    # Small shapes consistent with the module: (batch, planes, seq) = (2, 4, 16)
    N, C, L = 2, 4, 16
    ratio = 0.5
    half = int(C * ratio)
    rest = C - half

    key = jax.random.PRNGKey(0)
    kx, kg1, kb1, kg2, kb2 = jax.random.split(key, 5)
    x = jax.random.normal(kx, (N, C, L), dtype=jnp.float32)

    # Deterministic, non-trivial affine parameters (PyTorch default would be
    # weight=1, bias=0; perturb them to exercise the affine path).
    in_gamma = 1.0 + 0.1 * jax.random.normal(kg1, (half,), dtype=jnp.float32)
    in_beta = 0.1 * jax.random.normal(kb1, (half,), dtype=jnp.float32)
    bn_gamma = 1.0 + 0.1 * jax.random.normal(kg2, (rest,), dtype=jnp.float32)
    bn_beta = 0.1 * jax.random.normal(kb2, (rest,), dtype=jnp.float32)

    out = ibn1d(x, in_gamma, in_beta, bn_gamma, bn_beta, ratio=ratio)
    out = jax.block_until_ready(out)

    ref = ibn1d_ref(x, in_gamma, in_beta, bn_gamma, bn_beta, ratio=ratio)
    assert out.shape == (N, C, L)
    assert jnp.allclose(out, ref, atol=1e-4, rtol=1e-4), "mismatch vs reference"

    print("KERNEL_OK")
</pallas_src>

<mosaic_0001>
module attributes {stable_mosaic.version = 11 : i64} {
  func.func @_ibn1d_kernel(%arg0: i32, %arg1: i32, %arg2: memref<1x4x16xf32, #tpu.memory_space<vmem>>, %arg3: memref<4x1xf32, #tpu.memory_space<vmem>>, %arg4: memref<4x1xf32, #tpu.memory_space<vmem>>, %arg5: memref<1x4x16xf32, #tpu.memory_space<vmem>>) attributes {dimension_semantics = [#tpu.dimension_semantics<parallel>, #tpu.dimension_semantics<parallel>], iteration_bounds = array<i64: 2, 1>, scalar_prefetch = 0 : i64, scratch_operands = 0 : i64, tpu.core_type = #tpu.core_type<tc>, window_params = [{transform_indices = @transform_0, window_bounds = array<i64: 1, 4, 16>}, {transform_indices = @transform_1, window_bounds = array<i64: 4, 1>}, {transform_indices = @transform_2, window_bounds = array<i64: 4, 1>}, {transform_indices = @transform_3, window_bounds = array<i64: 1, 4, 16>}]} {
    %c0 = arith.constant 0 : index
    %c0_0 = arith.constant 0 : index
    %c0_1 = arith.constant 0 : index
    %0 = vector.load %arg2[%c0, %c0_0, %c0_1] : memref<1x4x16xf32, #tpu.memory_space<vmem>>, vector<1x4x16xf32>
    %cst = arith.constant dense<0.000000e+00> : vector<1x4xf32>
    %1 = vector.multi_reduction <add>, %0, %cst [2] : vector<1x4x16xf32> to vector<1x4xf32>
    %2 = vector.shape_cast %1 : vector<1x4xf32> to vector<1x4x1xf32>
    %3 = arith.mulf %0, %0 : vector<1x4x16xf32>
    %cst_2 = arith.constant dense<0.000000e+00> : vector<1x4xf32>
    %4 = vector.multi_reduction <add>, %3, %cst_2 [2] : vector<1x4x16xf32> to vector<1x4xf32>
    %5 = vector.shape_cast %4 : vector<1x4xf32> to vector<1x4x1xf32>
    %cst_3 = arith.constant 6.250000e-02 : f32
    %6 = vector.broadcast %cst_3 : f32 to vector<1x4x1xf32>
    %7 = arith.mulf %2, %6 : vector<1x4x1xf32>
    %cst_4 = arith.constant 6.250000e-02 : f32
    %8 = vector.broadcast %cst_4 : f32 to vector<1x4x1xf32>
    %9 = arith.mulf %5, %8 : vector<1x4x1xf32>
    %10 = arith.mulf %7, %7 : vector<1x4x1xf32>
    %11 = arith.subf %9, %10 : vector<1x4x1xf32>
    %cst_5 = arith.constant 0.000000e+00 : f32
    %12 = vector.broadcast %cst_5 : f32 to vector<1x4x1xf32>
    %13 = arith.maximumf %11, %12 : vector<1x4x1xf32>
    %c0_6 = arith.constant 0 : index
    %c0_7 = arith.constant 0 : index
    %14 = vector.load %arg3[%c0_6, %c0_7] : memref<4x1xf32, #tpu.memory_space<vmem>>, vector<4x1xf32>
    %c0_8 = arith.constant 0 : index
    %c0_9 = arith.constant 0 : index
    %15 = vector.load %arg4[%c0_8, %c0_9] : memref<4x1xf32, #tpu.memory_space<vmem>>, vector<4x1xf32>
    %cst_10 = arith.constant 9.99999974E-6 : f32
    %16 = vector.broadcast %cst_10 : f32 to vector<1x4x1xf32>
    %17 = arith.addf %13, %16 : vector<1x4x1xf32>
    %18 = math.rsqrt %17 : vector<1x4x1xf32>
    %19 = vector.shape_cast %14 : vector<4x1xf32> to vector<1x4x1xf32>
    %20 = arith.mulf %19, %18 : vector<1x4x1xf32>
    %21 = arith.mulf %7, %20 : vector<1x4x1xf32>
    %22 = vector.shape_cast %15 : vector<4x1xf32> to vector<1x4x1xf32>
    %23 = arith.subf %22, %21 : vector<1x4x1xf32>
    %c4_i32 = arith.constant 4 : i32
    %24 = arith.muli %arg1, %c4_i32 : i32
    %25 = tpu.iota {dimensions = array<i32: 0>} : vector<4x1xi32>
    %26 = vector.broadcast %24 : i32 to vector<4x1xi32>
    %27 = arith.addi %26, %25 : vector<4x1xi32>
    %c2_i32 = arith.constant 2 : i32
    %28 = vector.broadcast %c2_i32 : i32 to vector<4x1xi32>
    %29 = arith.cmpi slt, %27, %28 : vector<4x1xi32>
    %30 = vector.shape_cast %29 : vector<4x1xi1> to vector<1x4x1xi1>
    %31 = vector.shape_cast %14 : vector<4x1xf32> to vector<1x4x1xf32>
    %32 = arith.select %30, %20, %31 : vector<1x4x1xi1>, vector<1x4x1xf32>
    %33 = vector.shape_cast %29 : vector<4x1xi1> to vector<1x4x1xi1>
    %34 = vector.shape_cast %15 : vector<4x1xf32> to vector<1x4x1xf32>
    %35 = arith.select %33, %23, %34 : vector<1x4x1xi1>, vector<1x4x1xf32>
    %36 = vector.broadcast %32 : vector<1x4x1xf32> to vector<1x4x16xf32>
    %37 = arith.mulf %0, %36 : vector<1x4x16xf32>
    %38 = vector.broadcast %35 : vector<1x4x1xf32> to vector<1x4x16xf32>
    %39 = arith.addf %37, %38 : vector<1x4x16xf32>
    %c0_11 = arith.constant 0 : index
    %c0_12 = arith.constant 0 : index
    %c0_13 = arith.constant 0 : index
    %40 = vector.load %arg5[%c0_11, %c0_12, %c0_13] : memref<1x4x16xf32, #tpu.memory_space<vmem>>, vector<1x4x16xf32>
    tpu.vector_store %arg5[%c0_11, %c0_12, %c0_13], %39 {strides = array<i32>} : memref<1x4x16xf32, #tpu.memory_space<vmem>>, vector<1x4x16xf32>,
    return
  }
  func.func @transform_0(%arg0: i32, %arg1: i32) -> (i32, i32, i32) {
    %c0_i32 = arith.constant 0 : i32
    %c0_i32_0 = arith.constant 0 : i32
    return %arg0, %arg1, %c0_i32 : i32, i32, i32
  }
  func.func @transform_1(%arg0: i32, %arg1: i32) -> (i32, i32) {
    %c0_i32 = arith.constant 0 : i32
    %c0_i32_0 = arith.constant 0 : i32
    return %arg1, %c0_i32 : i32, i32
  }
  func.func @transform_2(%arg0: i32, %arg1: i32) -> (i32, i32) {
    %c0_i32 = arith.constant 0 : i32
    %c0_i32_0 = arith.constant 0 : i32
    return %arg1, %c0_i32 : i32, i32
  }
  func.func @transform_3(%arg0: i32, %arg1: i32) -> (i32, i32, i32) {
    %c0_i32 = arith.constant 0 : i32
    %c0_i32_0 = arith.constant 0 : i32
    return %arg0, %arg1, %c0_i32 : i32, i32, i32
  }
}

</mosaic_0001>

<llo_original>
// kernel: tpu_custom_call.1
$region0: #{tpu_custom_call.1}
  #allocation0 [shape = 'u32[]', space=smem, size = 0x4, offset = 0x4, fixed_abs, tag = 'smem constant byte address 0x4 - core index']
  #allocation1 [shape = 'u32[144,128]{1,0:T(1,128)}', space=vmem, size = 0x12000, scoped, tag = 'internal scratch']
  %s0 = inlined_call_operand.vmem [shape: f32[2,4,16], index: 0, kind: input, shape index: {}]
  %s1 = inlined_call_operand.vmem [shape: f32[4,1], index: 1, kind: input, shape index: {}]
  %s2 = inlined_call_operand.vmem [shape: f32[4,1], index: 2, kind: input, shape index: {}]
  %s3 = inlined_call_operand.hbm [shape: f32[2,4,16], index: 3, kind: output, shape index: {}]
  %s4 = sld [smem:[#allocation0]]
  $region45: #{tpu_custom_call.1} parent=0
    _
  %s6 = ssub.s32 1, %s4
  %s7 = scalar_select 0, %s6, %s4
  $region1: #{tpu_custom_call.1} parent=0
    #allocation2 [shape = 'u8[4096]{0}', space=vmem, size = 0x1000, scoped, tag = 'output window, operand 0']
    #allocation3 [shape = 's32[2]{0}', space=sflag, size = 0x8, scoped, tag = 'scoped memory for tpu_custom_call.1']
    %8 = vsyncpa [#allocation3], 0
    %s9 = scalar_lea.sflag [#allocation3], 1
    %10 = vsyncpa %s9, 0
    loop: start=0, step=1, limit=4
    $region2: #{tpu_custom_call.1} parent=1 // loop_pre_header
      _
    $region3: #{tpu_custom_call.1} parent=1 // loop_header
      %s12 = sphi 0, %s16
      %p13 = scmp.ge.s32.totalorder %s12, 4
      %s19 = sphi 0, %s31
      %s20 = sphi 0, %s27
      %s21 = sphi 0, %s19
      %s22 = sphi 0, %s20
      %s23 = sphi 0, %s21
      %s24 = sphi 0, %s22
      %s36 = sphi 0, %s38
      %s39 = sphi 0, %s36
      %s40 = sphi 0, %s39
      %s56 = sphi 0, %s40
      %s62 = sphi 0, %s64
      %s65 = sphi 0, %s62
      %s66 = sphi 0, %s65
      %s82 = sphi 0, %s66
      %s88 = sphi 0, %s90
      %s91 = sphi 0, %s88
      %s92 = sphi 0, %s91
      %s108 = sphi 0, %s92
      %s116 = sphi 0, %s118
      %s119 = sphi 0, %s116
      %s120 = sphi 0, %s119
      %s136 = sphi 0, %s120
    $region4: #{tpu_custom_call.1} parent=1 // loop_header_branch
      %15 = sbr.rel (%p13) target = $region8
    $region5: #{tpu_custom_call.1} parent=1 // loop_body
      %s17 = ssub.s32 %s12, 1
      %s18 = ssub.s32 %s12, 2
      %s25 = sadd.s32 1, %s20
      %p26 = scmp.ge.s32.totalorder %s25, 1
      %s27 = scalar_select %p26, 0, %s25
      %s28 = sadd.s32 1, %s19
      %s29 = scalar_select %p26, %s28, %s19
      %p30 = scmp.ge.s32.totalorder %s29, 2
      %s31 = scalar_select %p30, 0, %s29
      %s32 = ssub.s32 %s19, %s31
      %s33 = ssub.s32 %s20, %s27
      %s34 = sor.u32 %s32, %s33
      %p35 = scmp.eq.s32.totalorder %s34, 0
      %s37 = sadd.s32 %s36, 1
      %s38 = scalar_select %p35, %s36, %s37
      %p41 = pneg %p35
      %p42 = scmp.eq.s32.totalorder %s12, 1
      %p43 = por %p41, %p42
      %p44 = scmp.ne.s32.totalorder %s36, %s39
      %p45 = scmp.eq.s32.totalorder %s12, 0
      %p46 = por %p44, %p45
      %p47 = scmp.ne.s32.totalorder %s36, %s39
      %p48 = scmp.eq.s32.totalorder %s17, 1
      %p49 = por %p47, %p48
      %p50 = scmp.ne.s32.totalorder %s39, %s40
      %p51 = scmp.eq.s32.totalorder %s17, 0
      %p52 = por %p50, %p51
      %p53 = scmp.ne.s32.totalorder %s39, %s40
      %p54 = scmp.eq.s32.totalorder %s18, 1
      %p55 = por %p53, %p54
      %p57 = scmp.ne.s32.totalorder %s40, %s56
      %p58 = scmp.eq.s32.totalorder %s18, 0
      %p59 = por %p57, %p58
      %s60 = ssub.s32 %s20, %s27
      %p61 = scmp.eq.s32.totalorder %s60, 0
      %s63 = sadd.s32 %s62, 1
      %s64 = scalar_select %p61, %s62, %s63
      %p67 = pneg %p61
      %p68 = scmp.eq.s32.totalorder %s12, 1
      %p69 = por %p67, %p68
      %p70 = scmp.ne.s32.totalorder %s62, %s65
      %p71 = scmp.eq.s32.totalorder %s12, 0
      %p72 = por %p70, %p71
      %p73 = scmp.ne.s32.totalorder %s62, %s65
      %p74 = scmp.eq.s32.totalorder %s17, 1
      %p75 = por %p73, %p74
      %p76 = scmp.ne.s32.totalorder %s65, %s66
      %p77 = scmp.eq.s32.totalorder %s17, 0
      %p78 = por %p76, %p77
      %p79 = scmp.ne.s32.totalorder %s65, %s66
      %p80 = scmp.eq.s32.totalorder %s18, 1
      %p81 = por %p79, %p80
      %p83 = scmp.ne.s32.totalorder %s66, %s82
      %p84 = scmp.eq.s32.totalorder %s18, 0
      %p85 = por %p83, %p84
      %s86 = ssub.s32 %s20, %s27
      %p87 = scmp.eq.s32.totalorder %s86, 0
      %s89 = sadd.s32 %s88, 1
      %s90 = scalar_select %p87, %s88, %s89
      %p93 = pneg %p87
      %p94 = scmp.eq.s32.totalorder %s12, 1
      %p95 = por %p93, %p94
      %p96 = scmp.ne.s32.totalorder %s88, %s91
      %p97 = scmp.eq.s32.totalorder %s12, 0
      %p98 = por %p96, %p97
      %p99 = scmp.ne.s32.totalorder %s88, %s91
      %p100 = scmp.eq.s32.totalorder %s17, 1
      %p101 = por %p99, %p100
      %p102 = scmp.ne.s32.totalorder %s91, %s92
      %p103 = scmp.eq.s32.totalorder %s17, 0
      %p104 = por %p102, %p103
      %p105 = scmp.ne.s32.totalorder %s91, %s92
      %p106 = scmp.eq.s32.totalorder %s18, 1
      %p107 = por %p105, %p106
      %p109 = scmp.ne.s32.totalorder %s92, %s108
      %p110 = scmp.eq.s32.totalorder %s18, 0
      %p111 = por %p109, %p110
      %s112 = ssub.s32 %s19, %s31
      %s113 = ssub.s32 %s20, %s27
      %s114 = sor.u32 %s112, %s113
      %p115 = scmp.eq.s32.totalorder %s114, 0
      %s117 = sadd.s32 %s116, 1
      %s118 = scalar_select %p115, %s116, %s117
      %p121 = pneg %p115
      %p122 = scmp.eq.s32.totalorder %s12, 1
      %p123 = por %p121, %p122
      %p124 = scmp.ne.s32.totalorder %s116, %s119
      %p125 = scmp.eq.s32.totalorder %s12, 0
      %p126 = por %p124, %p125
      %p127 = scmp.ne.s32.totalorder %s116, %s119
      %p128 = scmp.eq.s32.totalorder %s17, 1
      %p129 = por %p127, %p128
      %p130 = scmp.ne.s32.totalorder %s119, %s120
      %p131 = scmp.eq.s32.totalorder %s17, 0
      %p132 = por %p130, %p131
      %p133 = scmp.ne.s32.totalorder %s119, %s120
      %p134 = scmp.eq.s32.totalorder %s18, 1
      %p135 = por %p133, %p134
      %p137 = scmp.ne.s32.totalorder %s120, %s136
      %p138 = scmp.eq.s32.totalorder %s18, 0
      %p139 = por %p137, %p138
      %p140 = scmp.le.s32.totalorder 1, %s12
      %p141 = scmp.lt.s32.totalorder %s12, 3
      %p142 = pnand %p140, %p141
      %p143 = pneg %p142
      // Predicated region
      $region9: #{tpu_custom_call.1} parent=5 // pred_check
        _
      $region10: #{tpu_custom_call.1} parent=5 // pred_check_branch
        %145 = sbr.rel (%p142) target = $region12
      $region11: #{tpu_custom_call.1} parent=5 // pred_region
        %s146 = ssub.s32 %s12, 1
        // Predicated region
        $region13: #{tpu_custom_call.1} parent=11 // pred_check
          %p147 = pneg %p78
        $region14: #{tpu_custom_call.1} parent=11 // pred_check_branch
          %149 = sbr.rel (%p147) target = $region16
        $region15: #{tpu_custom_call.1} parent=11 // pred_region
          %p150 = scmp.lt.s32.totalorder %s22, 0
          %s151 = scalar_select %p150, %s22, 0
          %s152 = smul.addr %s151, 4
          %s153 = scalar_lea.vmem %s1, %s152
        $region16: #{tpu_custom_call.1} parent=11 // pred_fallthru
          _
        // Predicated region
        $region17: #{tpu_custom_call.1} parent=11 // pred_check
          %p154 = pneg %p104
        $region18: #{tpu_custom_call.1} parent=11 // pred_check_branch
          %156 = sbr.rel (%p154) target = $region20
        $region19: #{tpu_custom_call.1} parent=11 // pred_region
          %p157 = scmp.lt.s32.totalorder %s22, 0
          %s158 = scalar_select %p157, %s22, 0
          %s159 = smul.addr %s158, 4
          %s160 = scalar_lea.vmem %s2, %s159
        $region20: #{tpu_custom_call.1} parent=11 // pred_fallthru
          _
      $region12: #{tpu_custom_call.1} parent=5 // pred_fallthru
        _
      %p161 = scmp.lt.s32.totalorder %s12, 2
      // Predicated region
      $region21: #{tpu_custom_call.1} parent=5 // pred_check
        %p162 = pneg %p161
      $region22: #{tpu_custom_call.1} parent=5 // pred_check_branch
        %164 = sbr.rel (%p162) target = $region24
      $region23: #{tpu_custom_call.1} parent=5 // pred_region
        // Predicated region
        $region25: #{tpu_custom_call.1} parent=23 // pred_check
          %p165 = pneg %p46
        $region26: #{tpu_custom_call.1} parent=23 // pred_check_branch
          %167 = sbr.rel (%p165) target = $region28
        $region27: #{tpu_custom_call.1} parent=23 // pred_region
          %p168 = scmp.lt.s32.totalorder %s19, 1
          %s169 = scalar_select %p168, %s19, 1
          %p170 = scmp.lt.s32.totalorder %s20, 0
          %s171 = scalar_select %p170, %s20, 0
          %s172 = sadd.s32 %s171, %s169
          %s173 = smul.addr %s172, 4
          %s174 = scalar_lea.vmem %s0, %s173
        $region28: #{tpu_custom_call.1} parent=23 // pred_fallthru
          _
      $region24: #{tpu_custom_call.1} parent=5 // pred_fallthru
        _
      %p175 = scmp.le.s32.totalorder 1, %s12
      %p176 = scmp.lt.s32.totalorder %s12, 3
      %p177 = pnand %p175, %p176
      %p178 = pneg %p177
      // Predicated region
      $region29: #{tpu_custom_call.1} parent=5 // pred_check
        _
      $region30: #{tpu_custom_call.1} parent=5 // pred_check_branch
        %180 = sbr.rel (%p177) target = $region32
      $region31: #{tpu_custom_call.1} parent=5 // pred_region
        %s181 = ssub.s32 %s12, 1
        %p182 = scmp.lt.s32.totalorder %s21, 1
        %s183 = scalar_select %p182, %s21, 1
        %p184 = scmp.lt.s32.totalorder %s22, 0
        %s185 = scalar_select %p184, %s22, 0
        %s186 = sadd.s32 %s185, %s183
        %s187 = smul.addr %s186, 4
        %s188 = scalar_lea.vmem %s0, %s187
        %p189 = pneg %p52
        %p190 = pneg %p49
        %p191 = scmp.lt.s32.totalorder %s22, 0
        %s192 = scalar_select %p191, %s22, 0
        %s193 = smul.addr %s192, 4
        %s194 = scalar_lea.vmem %s1, %s193
        %p195 = pneg %p78
        %p196 = pneg %p75
        %p197 = scmp.lt.s32.totalorder %s22, 0
        %s198 = scalar_select %p197, %s22, 0
        %s199 = smul.addr %s198, 4
        %s200 = scalar_lea.vmem %s2, %s199
        %p201 = pneg %p104
        %p202 = pneg %p101
        %p203 = pneg %p132
        %p204 = pneg %p129
        %s205 = sand.u32 %s119, 1
        %s206 = scalar_lea.sflag [#allocation3], %s205
        %s207 = sand.u32 %s119, 1
        %s208 = smul.addr %s207, 4
        %s209 = scalar_lea.vmem [#allocation2], %s208
        %p210 = scmp.lt.s32.totalorder %s21, 1
        %s211 = scalar_select %p210, %s21, 1
        %p212 = scmp.lt.s32.totalorder %s22, 0
        %s213 = scalar_select %p212, %s22, 0
        %s214 = sadd.s32 %s213, %s211
        %s215 = smul.addr %s214, 4
        %s216 = scalar_lea.vmem %s0, %s215
        %p217 = scmp.lt.s32.totalorder %s22, 0
        %s218 = scalar_select %p217, %s22, 0
        %s219 = smul.addr %s218, 4
        %s220 = scalar_lea.vmem %s1, %s219
        %p221 = scmp.lt.s32.totalorder %s22, 0
        %s222 = scalar_select %p221, %s22, 0
        %s223 = smul.addr %s222, 4
        %s224 = scalar_lea.vmem %s2, %s223
        %v225 = vld [vmem:[%s216] sm:$0xf]
        %vm226 = vcmask 125952
        %v227 = vsel %vm226, %v225, 0.0
        %228 = vadd.xlane.f32.xlu0 %v227
        %v229 = vpop.xlane.xlu0 %228
        %v230 = vmul.f32 %v225, %v225
        %v231 = vsel %vm226, %v230, 0.0
        %232 = vadd.xlane.f32.xlu0 %v231
        %v233 = vpop.xlane.xlu0 %232
        %v234 = vmul.f32 %v229, 0.0625
        %v235 = vmul.f32 %v233, 0.0625
        %v236 = vmul.f32 %v234, %v234
        %v237 = vsub.f32 %v235, %v236
        %v238 = vmax.f32 %v237, 0.0
        %v239 = vld [vmem:[%s220] sm:$0xf]
        %v240 = vld [vmem:[%s224] sm:$0xf]
        %v241 = vadd.f32 %v238, 1e-05
        %v242 = vrsqrt.pop %v241
        %v243 = vmul.f32 %v239, %v242
        %v244 = vmul.f32 %v234, %v243
        %v245 = vsub.f32 %v240, %v244
        %s246 = smul.u32 %s22, 4
        %v247 = vlaneseq
        %v248 = vshrl.u32 %v247, 7
        %v249 = vstv %s246
        %v250 = vadd.s32 %v249, %v248
        %vm251 = vcmp.lt.s32.totalorder %v250, 2
        %v252 = vsel %vm251, %v243, %v239
        %v253 = vsel %vm251, %v245, %v240
        %255 = vset.pattern.permute.xlu0 0
        %256 = vperm.xlu0 %255, %v252
        %v257 = vpop.permute.xlu0 %256
        %v259 = vmul.f32 %v225, %v257
        %261 = vset.pattern.permute.xlu0 0
        %262 = vperm.xlu0 %261, %v253
        %v263 = vpop.permute.xlu0 %262
        %v265 = vadd.f32 %v259, %v263
        %266 = vst.msk [vmem:[%s209] sm:$0xf] %vm226, %v265
        %s267 = sand.u32 %s119, 1
        %s268 = scalar_lea.sflag [#allocation3], %s267
        %s269 = sand.u32 %s119, 1
        %s270 = smul.addr %s269, 4
        %s271 = scalar_lea.vmem [#allocation2], %s270
        // Predicated region
        $region33: #{tpu_custom_call.1} parent=31 // pred_check
          %p272 = pneg %p129
        $region34: #{tpu_custom_call.1} parent=31 // pred_check_branch
          %274 = sbr.rel (%p272) target = $region36
        $region35: #{tpu_custom_call.1} parent=31 // pred_region
          %s276 = ssub.s32 64, 64
          %277 = vsyncadd %s268, %s276
          %s278 = sadd.s32 %s22, %s21
          %s279 = smul.addr %s278, 64
          %s280 = scalar_lea.hbm %s3, %s279
          %s282 = sshll.u32 %s271, 4
          %s283 = int_to_ptr.vmem [resolvable:$true] %s282
          %285 = dma.vmem_to_hbm [thread:$0]  %s283, 64, %s280, %s268
        $region36: #{tpu_custom_call.1} parent=31 // pred_fallthru
          _
      $region32: #{tpu_custom_call.1} parent=5 // pred_fallthru
        _
      %p286 = scmp.le.s32.totalorder 2, %s12
      // Predicated region
      $region37: #{tpu_custom_call.1} parent=5 // pred_check
        %p287 = pneg %p286
      $region38: #{tpu_custom_call.1} parent=5 // pred_check_branch
        %289 = sbr.rel (%p287) target = $region40
      $region39: #{tpu_custom_call.1} parent=5 // pred_region
        %s290 = ssub.s32 %s12, 2
        // Predicated region
        $region41: #{tpu_custom_call.1} parent=39 // pred_check
          %p291 = pneg %p135
        $region42: #{tpu_custom_call.1} parent=39 // pred_check_branch
          %293 = sbr.rel (%p291) target = $region44
        $region43: #{tpu_custom_call.1} parent=39 // pred_region
          %s294 = sand.u32 %s120, 1
          %s295 = scalar_lea.sflag [#allocation3], %s294
          %s296 = sand.u32 %s120, 1
          %s297 = smul.addr %s296, 4
          %s298 = scalar_lea.vmem [#allocation2], %s297
          %299 = dma.done %s295, 64
        $region44: #{tpu_custom_call.1} parent=39 // pred_fallthru
          _
      $region40: #{tpu_custom_call.1} parent=5 // pred_fallthru
        _
    $region6: #{tpu_custom_call.1} parent=1 // loop_footer
      %s16 = sadd.s32 1, %s12
    $region7: #{tpu_custom_call.1} parent=1 // loop_footer_branch
      %11 = sbr.rel target = $region3
    $region8: #{tpu_custom_call.1} parent=1 // loop_exit
      _
    %300 = vsyncpa [#allocation3], 1
    %s301 = scalar_lea.sflag [#allocation3], 1
    %302 = vsyncpa %s301, 1

</llo_original>
